<compile_context>
chip_gen: v5e
topology: v5e:2x2
jax: 0.10.0
libtpu: 0.0.40
codegen_flags: <defaults>
</compile_context>

<pallas_src>
import jax
import jax.numpy as jnp
from jax import lax
from jax.experimental import pallas as pl
from jax.experimental.pallas import tpu as pltpu


# ---------------------------------------------------------------------------
# helpers
# ---------------------------------------------------------------------------

def _rup(n, m):
    return ((n + m - 1) // m) * m


def _pad2(x, rows, cols):
    return jnp.pad(x, ((0, rows - x.shape[0]), (0, cols - x.shape[1])))


# ---------------------------------------------------------------------------
# fused Pallas kernel
# ---------------------------------------------------------------------------

def _make_dmf_kernel(n_user, n_item, tb, ku, ki, b_actual, n_btiles):
    """Fused kernel: one-hot gathers + both MLP towers + score epilogue."""
    n_params = 2 * (n_user + n_item)

    def kernel(u_idx_ref, i_idx_ref, mat_u_ref, mat_i_ref, *rest):
        p_refs = rest[:n_params]
        o_ref = rest[n_params]          # (total, 1) resident output
        nu_ref = rest[n_params + 1]     # (total, 1) ||U||_F^2 accumulator
        nv_ref = rest[n_params + 2]     # (total, 1) ||V||_F^2 accumulator

        t = pl.program_id(0)

        @pl.when(t == 0)
        def _init():
            nu_ref[...] = jnp.zeros_like(nu_ref)
            nv_ref[...] = jnp.zeros_like(nv_ref)

        # ---- one-hot MXU gathers (replace the old serialized per-row loop).
        # u_idx / i_idx are (tb, 1) int32 blocks living in VMEM.
        u_idx = u_idx_ref[...]
        i_idx = i_idx_ref[...]
        oh_u = (lax.broadcasted_iota(jnp.int32, (tb, ku), 1) == u_idx
                ).astype(jnp.float32)                       # (tb, ku)
        oh_i = (lax.broadcasted_iota(jnp.int32, (tb, ki), 1) == i_idx
                ).astype(jnp.float32)                       # (tb, ki)
        # Gather matmuls kept in f32 so the selected rows are exact.
        u = jnp.dot(oh_u, mat_u_ref[...],
                    preferred_element_type=jnp.float32)     # (tb, ki)
        v = jnp.dot(oh_i, mat_i_ref[...],
                    preferred_element_type=jnp.float32)     # (tb, ku)

        # ---- MLP towers: weights pre-transposed/padded at prep time (no .T).
        # MXU operands in the weights' dtype (bf16 path), bias+ReLU in f32.
        def tower(x, offs, n_layers):
            for l in range(n_layers):
                w_ref = p_refs[offs + 2 * l]
                b = p_refs[offs + 2 * l + 1][...]           # (1, Dout) f32
                x = jnp.dot(x.astype(w_ref.dtype), w_ref[...],
                            preferred_element_type=jnp.float32) + b
                x = jnp.maximum(x, 0.0)
            return x

        u = tower(u, 0, n_user)                             # (tb, d_lat)
        v = tower(v, 2 * n_user, n_item)                    # (tb, d_lat)

        # ---- zero the padded batch rows so they don't pollute norms / scores.
        rows = lax.broadcasted_iota(jnp.int32, (tb, 1), 0) + t * tb
        valid = rows < b_actual
        u = jnp.where(valid, u, 0.0)
        v = jnp.where(valid, v, 0.0)

        # ---- accumulate the FULL-batch squared Frobenius norms across tiles.
        nu_ref[...] += jnp.sum(u * u)
        nv_ref[...] += jnp.sum(v * v)

        # ---- per-row dot products for this tile (elementwise + lane reduce,
        # O(B*D) — no O(B^2*D) Gram matrix), stored unnormalized.
        s = jnp.sum(u * v, axis=1, keepdims=True)           # (tb, 1)
        start = pl.multiple_of(t * tb, tb)
        o_ref[pl.ds(start, tb), :] = s

        # ---- last tile: normalize the whole resident output in one shot.
        @pl.when(t == n_btiles - 1)
        def _fin():
            inv = lax.rsqrt(nu_ref[...]) * lax.rsqrt(nv_ref[...])
            o_ref[...] = o_ref[...] * inv

    return kernel


# ---------------------------------------------------------------------------
# one-time preparation: pad / pre-transpose / cast everything to kernel layouts
# ---------------------------------------------------------------------------

def prepare_dmf(params, matrix, mxu_dtype=jnp.bfloat16):
    matrix = jnp.asarray(matrix, jnp.float32)
    num_users, num_items = matrix.shape
    ku = _rup(num_users, 128)   # one-hot K dim for user gather / item-tower input
    ki = _rup(num_items, 128)   # one-hot K dim for item gather / user-tower input

    # TODO(synk): for realistic sizes keep these in HBM (memory_space=pl.ANY)
    # and DMA-gather only the requested rows instead of two VMEM-resident copies.
    mat_u = _pad2(matrix, ku, ki)        # row r  == matrix[r, :]
    mat_i = _pad2(matrix.T, ki, ku)      # row c  == matrix[:, c]

    def prep_tower(layers, d_in):
        ops = []
        for w, b in layers:              # PyTorch convention: w is (Dout, Din)
            dout, _ = w.shape
            d_out = _rup(dout, 128)
            w_p = _pad2(w.T, d_in, d_out).astype(mxu_dtype)        # (Din_p, Dout_p)
            b_p = _pad2(b.reshape(1, dout), 1, d_out).astype(jnp.float32)
            ops.append((w_p, b_p))
            d_in = d_out
        return ops, d_in

    user_ops, d_u = prep_tower(params["user_layers"], ki)
    item_ops, d_i = prep_tower(params["item_layers"], ku)
    assert d_u == d_i, "both towers must end at the same latent width"

    flat = []
    for w, b in user_ops + item_ops:
        flat.extend([w, b])

    return {
        "mat_u": mat_u, "mat_i": mat_i, "flat_params": flat,
        "n_user": len(user_ops), "n_item": len(item_ops),
        "num_users": num_users, "num_items": num_items, "ku": ku, "ki": ki,
    }


# ---------------------------------------------------------------------------
# fused forward
# ---------------------------------------------------------------------------

def dmf_forward(prep, user_indices, item_indices, *, batch_tile=128):
    B = int(user_indices.shape[0])
    tb = min(_rup(B, 8), _rup(batch_tile, 8))     # rows per grid step
    n_bt = -(-B // tb)                            # number of batch tiles
    total = n_bt * tb

    # 1-based -> 0-based, clamped; padded slots gather row 0 and are masked
    # out inside the kernel before norms / scores.
    u_idx = jnp.clip(user_indices.astype(jnp.int32) - 1, 0, prep["num_users"] - 1)
    i_idx = jnp.clip(item_indices.astype(jnp.int32) - 1, 0, prep["num_items"] - 1)
    u_idx = jnp.pad(u_idx, (0, total - B)).reshape(total, 1)
    i_idx = jnp.pad(i_idx, (0, total - B)).reshape(total, 1)

    flat = prep["flat_params"]
    kernel = _make_dmf_kernel(prep["n_user"], prep["n_item"], tb,
                              prep["ku"], prep["ki"], B, n_bt)

    in_specs = [
        pl.BlockSpec((tb, 1), lambda t: (t, 0)),                    # user indices
        pl.BlockSpec((tb, 1), lambda t: (t, 0)),                    # item indices
        pl.BlockSpec(prep["mat_u"].shape, lambda t: (0, 0)),        # matrix rows
        pl.BlockSpec(prep["mat_i"].shape, lambda t: (0, 0)),        # matrix cols
    ] + [pl.BlockSpec(p.shape, lambda t: (0, 0)) for p in flat]     # weights/biases

    # VMEM budget from the actual resident footprint (v7x: 64 MiB physical).
    footprint = sum(int(x.size) * x.dtype.itemsize
                    for x in (prep["mat_u"], prep["mat_i"], *flat))
    footprint += 3 * total * 4 + 4 * tb * 4
    vmem_limit = int(min(64 << 20, max(32 << 20, 3 * footprint)))

    out = pl.pallas_call(
        kernel,
        out_shape=jax.ShapeDtypeStruct((total, 1), jnp.float32),
        grid_spec=pltpu.PrefetchScalarGridSpec(
            num_scalar_prefetch=0,
            grid=(n_bt,),
            in_specs=in_specs,
            out_specs=pl.BlockSpec((total, 1), lambda t: (0, 0)),   # resident
            scratch_shapes=[pltpu.VMEM((total, 1), jnp.float32),    # ||U||^2
                            pltpu.VMEM((total, 1), jnp.float32)],   # ||V||^2
        ),
        compiler_params=pltpu.CompilerParams(
            # batch axis is a reduction for the full-batch norms -> arbitrary
            dimension_semantics=("arbitrary",),
            vmem_limit_bytes=vmem_limit,
        ),
    )(u_idx, i_idx, prep["mat_u"], prep["mat_i"], *flat)

    return out[:B, 0]


# ---------------------------------------------------------------------------
# parameter construction (mimics nn.Linear default init bounds)
# ---------------------------------------------------------------------------

def init_linear(key, in_size, out_size):
    kw, kb = jax.random.split(key)
    bound = 1.0 / jnp.sqrt(float(in_size))
    w = jax.random.uniform(kw, (out_size, in_size), jnp.float32, -bound, bound)
    b = jax.random.uniform(kb, (out_size,), jnp.float32, -bound, bound)
    return w, b


def init_dmf_params(key, config):
    params = {"user_layers": [], "item_layers": []}
    for i, in_size in enumerate(config["user_layers"][:-1]):
        out_size = config["user_layers"][i + 1]
        key, sub = jax.random.split(key)
        params["user_layers"].append(init_linear(sub, in_size, out_size))
    for i, in_size in enumerate(config["item_layers"][:-1]):
        out_size = config["item_layers"][i + 1]
        key, sub = jax.random.split(key)
        params["item_layers"].append(init_linear(sub, in_size, out_size))
    # affine_output / sigmoid exist in __init__ but are unused in forward().
    key, sub = jax.random.split(key)
    params["affine_output"] = init_linear(sub, config["latent_dim"], 1)
    return params


# ---------------------------------------------------------------------------
# pure-JAX reference for validation
# ---------------------------------------------------------------------------

def dmf_forward_ref(params, matrix, user_indices, item_indices):
    u = matrix[user_indices - 1, :]
    v = matrix[:, item_indices - 1].T
    for w, b in params["user_layers"]:
        u = jnp.maximum(u @ w.T + b, 0.0)
    for w, b in params["item_layers"]:
        v = jnp.maximum(v @ w.T + b, 0.0)
    y = jnp.sum(u * v, axis=1)
    return y / (jnp.linalg.norm(u) * jnp.linalg.norm(v))


# ---------------------------------------------------------------------------

if __name__ == "__main__":
    key = jax.random.PRNGKey(0)

    num_users, num_items, latent_dim = 32, 48, 16
    config = {
        "num_users": num_users,
        "num_items": num_items,
        "latent_dim": latent_dim,
        "user_layers": [num_items, 32, latent_dim],   # input dim = num_items
        "item_layers": [num_users, 24, latent_dim],   # input dim = num_users
    }

    k_mat, k_u, k_i, k_p, k_u2, k_i2 = jax.random.split(key, 6)
    matrix = jax.random.uniform(k_mat, (num_users, num_items), jnp.float32, 0.0, 5.0)
    config["matrix"] = matrix
    params = init_dmf_params(k_p, config)

    # --- test 1: small batch (not a multiple of 8 -> exercises row masking), f32 MXU
    batch = 6
    user_indices = jax.random.randint(k_u, (batch,), 1, num_users + 1)
    item_indices = jax.random.randint(k_i, (batch,), 1, num_items + 1)
    y_ref = dmf_forward_ref(params, matrix, user_indices, item_indices)

    prep_f32 = prepare_dmf(params, matrix, mxu_dtype=jnp.float32)
    y = jax.block_until_ready(dmf_forward(prep_f32, user_indices, item_indices))
    assert y.shape == (batch,)
    assert jnp.allclose(y, y_ref, rtol=2e-2, atol=5e-3), (y, y_ref)

    # --- test 2: same inputs, bf16 MXU operands (f32 accumulate / epilogue)
    prep_bf16 = prepare_dmf(params, matrix, mxu_dtype=jnp.bfloat16)
    y16 = jax.block_until_ready(dmf_forward(prep_bf16, user_indices, item_indices))
    assert jnp.allclose(y16, y_ref, rtol=1e-1, atol=2e-2), (y16, y_ref)

    # --- test 3: multi-tile batch grid (forced small tile) with cross-tile norms
    batch2 = 20
    user_indices2 = jax.random.randint(k_u2, (batch2,), 1, num_users + 1)
    item_indices2 = jax.random.randint(k_i2, (batch2,), 1, num_items + 1)
    y2_ref = dmf_forward_ref(params, matrix, user_indices2, item_indices2)
    y2 = jax.block_until_ready(
        dmf_forward(prep_f32, user_indices2, item_indices2, batch_tile=8))
    assert y2.shape == (batch2,)
    assert jnp.allclose(y2, y2_ref, rtol=2e-2, atol=5e-3), (y2, y2_ref)

    print("KERNEL_OK")
</pallas_src>

<mosaic_0001>
module attributes {stable_mosaic.version = 11 : i64} {
  func.func @kernel(%arg0: i32, %arg1: memref<8x1xi32, #tpu.memory_space<vmem>>, %arg2: memref<8x1xi32, #tpu.memory_space<vmem>>, %arg3: memref<128x128xf32, #tpu.memory_space<vmem>>, %arg4: memref<128x128xf32, #tpu.memory_space<vmem>>, %arg5: memref<128x128xf32, #tpu.memory_space<vmem>>, %arg6: memref<1x128xf32, #tpu.memory_space<vmem>>, %arg7: memref<128x128xf32, #tpu.memory_space<vmem>>, %arg8: memref<1x128xf32, #tpu.memory_space<vmem>>, %arg9: memref<128x128xf32, #tpu.memory_space<vmem>>, %arg10: memref<1x128xf32, #tpu.memory_space<vmem>>, %arg11: memref<128x128xf32, #tpu.memory_space<vmem>>, %arg12: memref<1x128xf32, #tpu.memory_space<vmem>>, %arg13: memref<8x1xf32, #tpu.memory_space<vmem>>, %arg14: memref<8x1xf32, #tpu.memory_space<vmem>>, %arg15: memref<8x1xf32, #tpu.memory_space<vmem>>) attributes {dimension_semantics = [#tpu.dimension_semantics<arbitrary>], iteration_bounds = array<i64: 1>, scalar_prefetch = 0 : i64, scratch_operands = 2 : i64, tpu.core_type = #tpu.core_type<tc>, window_params = [{transform_indices = @transform_0, window_bounds = array<i64: 8, 1>}, {transform_indices = @transform_1, window_bounds = array<i64: 8, 1>}, {pipeline_mode = #tpu.pipeline_mode<synchronous>, transform_indices = @transform_2, window_bounds = array<i64: 128, 128>}, {pipeline_mode = #tpu.pipeline_mode<synchronous>, transform_indices = @transform_3, window_bounds = array<i64: 128, 128>}, {pipeline_mode = #tpu.pipeline_mode<synchronous>, transform_indices = @transform_4, window_bounds = array<i64: 128, 128>}, {pipeline_mode = #tpu.pipeline_mode<synchronous>, transform_indices = @transform_5, window_bounds = array<i64: 1, 128>}, {pipeline_mode = #tpu.pipeline_mode<synchronous>, transform_indices = @transform_6, window_bounds = array<i64: 128, 128>}, {pipeline_mode = #tpu.pipeline_mode<synchronous>, transform_indices = @transform_7, window_bounds = array<i64: 1, 128>}, {pipeline_mode = #tpu.pipeline_mode<synchronous>, transform_indices = @transform_8, window_bounds = array<i64: 128, 128>}, {pipeline_mode = #tpu.pipeline_mode<synchronous>, transform_indices = @transform_9, window_bounds = array<i64: 1, 128>}, {pipeline_mode = #tpu.pipeline_mode<synchronous>, transform_indices = @transform_10, window_bounds = array<i64: 128, 128>}, {pipeline_mode = #tpu.pipeline_mode<synchronous>, transform_indices = @transform_11, window_bounds = array<i64: 1, 128>}, {pipeline_mode = #tpu.pipeline_mode<synchronous>, transform_indices = @transform_12, window_bounds = array<i64: 8, 1>}]} {
    %c0_i32 = arith.constant 0 : i32
    %0 = arith.cmpi eq, %arg0, %c0_i32 : i32
    %1 = arith.extui %0 : i1 to i32
    %c0_i32_0 = arith.constant 0 : i32
    %2 = arith.cmpi ne, %1, %c0_i32_0 : i32
    scf.if %2 {
      %cst_50 = arith.constant 0.000000e+00 : f32
      %89 = vector.broadcast %cst_50 : f32 to vector<8x1xf32>
      %c0_51 = arith.constant 0 : index
      %c0_52 = arith.constant 0 : index
      %90 = vector.load %arg14[%c0_51, %c0_52] : memref<8x1xf32, #tpu.memory_space<vmem>>, vector<8x1xf32>
      tpu.vector_store %arg14[%c0_51, %c0_52], %89 {strides = array<i32>} : memref<8x1xf32, #tpu.memory_space<vmem>>, vector<8x1xf32>,
      %cst_53 = arith.constant 0.000000e+00 : f32
      %91 = vector.broadcast %cst_53 : f32 to vector<8x1xf32>
      %c0_54 = arith.constant 0 : index
      %c0_55 = arith.constant 0 : index
      %92 = vector.load %arg15[%c0_54, %c0_55] : memref<8x1xf32, #tpu.memory_space<vmem>>, vector<8x1xf32>
      tpu.vector_store %arg15[%c0_54, %c0_55], %91 {strides = array<i32>} : memref<8x1xf32, #tpu.memory_space<vmem>>, vector<8x1xf32>,
    } else {
    }
    %c0 = arith.constant 0 : index
    %c0_1 = arith.constant 0 : index
    %3 = vector.load %arg1[%c0, %c0_1] : memref<8x1xi32, #tpu.memory_space<vmem>>, vector<8x1xi32>
    %c0_2 = arith.constant 0 : index
    %c0_3 = arith.constant 0 : index
    %4 = vector.load %arg2[%c0_2, %c0_3] : memref<8x1xi32, #tpu.memory_space<vmem>>, vector<8x1xi32>
    %5 = tpu.iota {dimensions = array<i32: 1>} : vector<8x128xi32>
    %6 = vector.broadcast %3 : vector<8x1xi32> to vector<8x128xi32>
    %7 = arith.cmpi eq, %5, %6 : vector<8x128xi32>
    %8 = arith.extui %7 : vector<8x128xi1> to vector<8x128xi32>
    %9 = arith.sitofp %8 : vector<8x128xi32> to vector<8x128xf32>
    %10 = tpu.iota {dimensions = array<i32: 1>} : vector<8x128xi32>
    %11 = vector.broadcast %4 : vector<8x1xi32> to vector<8x128xi32>
    %12 = arith.cmpi eq, %10, %11 : vector<8x128xi32>
    %13 = arith.extui %12 : vector<8x128xi1> to vector<8x128xi32>
    %14 = arith.sitofp %13 : vector<8x128xi32> to vector<8x128xf32>
    %c0_4 = arith.constant 0 : index
    %c0_5 = arith.constant 0 : index
    %15 = vector.load %arg3[%c0_4, %c0_5] : memref<128x128xf32, #tpu.memory_space<vmem>>, vector<128x128xf32>
    %cst = arith.constant dense<0.000000e+00> : vector<8x128xf32>
    %16 = tpu.matmul %9, %15, %cst {dimension_numbers = #tpu.dot_dimension_numbers<[1], [0], [0], [1], [0, 0, 1, 1], [], []>} : vector<8x128xf32>, vector<128x128xf32>, vector<8x128xf32> -> vector<8x128xf32>
    %c0_6 = arith.constant 0 : index
    %c0_7 = arith.constant 0 : index
    %17 = vector.load %arg4[%c0_6, %c0_7] : memref<128x128xf32, #tpu.memory_space<vmem>>, vector<128x128xf32>
    %cst_8 = arith.constant dense<0.000000e+00> : vector<8x128xf32>
    %18 = tpu.matmul %14, %17, %cst_8 {dimension_numbers = #tpu.dot_dimension_numbers<[1], [0], [0], [1], [0, 0, 1, 1], [], []>} : vector<8x128xf32>, vector<128x128xf32>, vector<8x128xf32> -> vector<8x128xf32>
    %c0_9 = arith.constant 0 : index
    %c0_10 = arith.constant 0 : index
    %19 = vector.load %arg6[%c0_9, %c0_10] : memref<1x128xf32, #tpu.memory_space<vmem>>, vector<1x128xf32>
    %c0_11 = arith.constant 0 : index
    %c0_12 = arith.constant 0 : index
    %20 = vector.load %arg5[%c0_11, %c0_12] : memref<128x128xf32, #tpu.memory_space<vmem>>, vector<128x128xf32>
    %cst_13 = arith.constant dense<0.000000e+00> : vector<8x128xf32>
    %21 = tpu.matmul %16, %20, %cst_13 {dimension_numbers = #tpu.dot_dimension_numbers<[1], [0], [0], [1], [0, 0, 1, 1], [], []>} : vector<8x128xf32>, vector<128x128xf32>, vector<8x128xf32> -> vector<8x128xf32>
    %22 = vector.broadcast %19 : vector<1x128xf32> to vector<8x128xf32>
    %23 = arith.addf %21, %22 : vector<8x128xf32>
    %cst_14 = arith.constant 0.000000e+00 : f32
    %24 = vector.broadcast %cst_14 : f32 to vector<8x128xf32>
    %25 = arith.maximumf %23, %24 : vector<8x128xf32>
    %c0_15 = arith.constant 0 : index
    %c0_16 = arith.constant 0 : index
    %26 = vector.load %arg8[%c0_15, %c0_16] : memref<1x128xf32, #tpu.memory_space<vmem>>, vector<1x128xf32>
    %c0_17 = arith.constant 0 : index
    %c0_18 = arith.constant 0 : index
    %27 = vector.load %arg7[%c0_17, %c0_18] : memref<128x128xf32, #tpu.memory_space<vmem>>, vector<128x128xf32>
    %cst_19 = arith.constant dense<0.000000e+00> : vector<8x128xf32>
    %28 = tpu.matmul %25, %27, %cst_19 {dimension_numbers = #tpu.dot_dimension_numbers<[1], [0], [0], [1], [0, 0, 1, 1], [], []>} : vector<8x128xf32>, vector<128x128xf32>, vector<8x128xf32> -> vector<8x128xf32>
    %29 = vector.broadcast %26 : vector<1x128xf32> to vector<8x128xf32>
    %30 = arith.addf %28, %29 : vector<8x128xf32>
    %cst_20 = arith.constant 0.000000e+00 : f32
    %31 = vector.broadcast %cst_20 : f32 to vector<8x128xf32>
    %32 = arith.maximumf %30, %31 : vector<8x128xf32>
    %c0_21 = arith.constant 0 : index
    %c0_22 = arith.constant 0 : index
    %33 = vector.load %arg10[%c0_21, %c0_22] : memref<1x128xf32, #tpu.memory_space<vmem>>, vector<1x128xf32>
    %c0_23 = arith.constant 0 : index
    %c0_24 = arith.constant 0 : index
    %34 = vector.load %arg9[%c0_23, %c0_24] : memref<128x128xf32, #tpu.memory_space<vmem>>, vector<128x128xf32>
    %cst_25 = arith.constant dense<0.000000e+00> : vector<8x128xf32>
    %35 = tpu.matmul %18, %34, %cst_25 {dimension_numbers = #tpu.dot_dimension_numbers<[1], [0], [0], [1], [0, 0, 1, 1], [], []>} : vector<8x128xf32>, vector<128x128xf32>, vector<8x128xf32> -> vector<8x128xf32>
    %36 = vector.broadcast %33 : vector<1x128xf32> to vector<8x128xf32>
    %37 = arith.addf %35, %36 : vector<8x128xf32>
    %cst_26 = arith.constant 0.000000e+00 : f32
    %38 = vector.broadcast %cst_26 : f32 to vector<8x128xf32>
    %39 = arith.maximumf %37, %38 : vector<8x128xf32>
    %c0_27 = arith.constant 0 : index
    %c0_28 = arith.constant 0 : index
    %40 = vector.load %arg12[%c0_27, %c0_28] : memref<1x128xf32, #tpu.memory_space<vmem>>, vector<1x128xf32>
    %c0_29 = arith.constant 0 : index
    %c0_30 = arith.constant 0 : index
    %41 = vector.load %arg11[%c0_29, %c0_30] : memref<128x128xf32, #tpu.memory_space<vmem>>, vector<128x128xf32>
    %cst_31 = arith.constant dense<0.000000e+00> : vector<8x128xf32>
    %42 = tpu.matmul %39, %41, %cst_31 {dimension_numbers = #tpu.dot_dimension_numbers<[1], [0], [0], [1], [0, 0, 1, 1], [], []>} : vector<8x128xf32>, vector<128x128xf32>, vector<8x128xf32> -> vector<8x128xf32>
    %43 = vector.broadcast %40 : vector<1x128xf32> to vector<8x128xf32>
    %44 = arith.addf %42, %43 : vector<8x128xf32>
    %cst_32 = arith.constant 0.000000e+00 : f32
    %45 = vector.broadcast %cst_32 : f32 to vector<8x128xf32>
    %46 = arith.maximumf %44, %45 : vector<8x128xf32>
    %47 = tpu.iota {dimensions = array<i32: 0>} : vector<8x1xi32>
    %c8_i32 = arith.constant 8 : i32
    %48 = arith.muli %arg0, %c8_i32 : i32
    %49 = vector.broadcast %48 : i32 to vector<8x1xi32>
    %50 = arith.addi %47, %49 : vector<8x1xi32>
    %c6_i32 = arith.constant 6 : i32
    %51 = vector.broadcast %c6_i32 : i32 to vector<8x1xi32>
    %52 = arith.cmpi slt, %50, %51 : vector<8x1xi32>
    %cst_33 = arith.constant 0.000000e+00 : f32
    %53 = vector.shape_cast %52 : vector<8x1xi1> to vector<8x1xi1>
    %54 = vector.broadcast %53 : vector<8x1xi1> to vector<8x128xi1>
    %55 = vector.broadcast %cst_33 : f32 to vector<8x128xf32>
    %56 = arith.select %54, %32, %55 : vector<8x128xi1>, vector<8x128xf32>
    %cst_34 = arith.constant 0.000000e+00 : f32
    %57 = vector.shape_cast %52 : vector<8x1xi1> to vector<8x1xi1>
    %58 = vector.broadcast %57 : vector<8x1xi1> to vector<8x128xi1>
    %59 = vector.broadcast %cst_34 : f32 to vector<8x128xf32>
    %60 = arith.select %58, %46, %59 : vector<8x128xi1>, vector<8x128xf32>
    %c0_35 = arith.constant 0 : index
    %c0_36 = arith.constant 0 : index
    %61 = vector.load %arg14[%c0_35, %c0_36] : memref<8x1xf32, #tpu.memory_space<vmem>>, vector<8x1xf32>
    %62 = arith.mulf %56, %56 : vector<8x128xf32>
    %63 = vector.shape_cast %62 : vector<8x128xf32> to vector<1x8x128xf32>
    %cst_37 = arith.constant dense<0.000000e+00> : vector<1xf32>
    %64 = vector.multi_reduction <add>, %63, %cst_37 [1, 2] : vector<1x8x128xf32> to vector<1xf32>
    %65 = vector.shape_cast %64 : vector<1xf32> to vector<1x1x1xf32>
    %66 = vector.extract %65[0, 0, 0] : f32 from vector<1x1x1xf32>
    %67 = vector.broadcast %66 : f32 to vector<8x1xf32>
    %68 = arith.addf %61, %67 : vector<8x1xf32>
    %c0_38 = arith.constant 0 : index
    %c0_39 = arith.constant 0 : index
    %69 = vector.load %arg14[%c0_38, %c0_39] : memref<8x1xf32, #tpu.memory_space<vmem>>, vector<8x1xf32>
    tpu.vector_store %arg14[%c0_38, %c0_39], %68 {strides = array<i32>} : memref<8x1xf32, #tpu.memory_space<vmem>>, vector<8x1xf32>,
    %c0_40 = arith.constant 0 : index
    %c0_41 = arith.constant 0 : index
    %70 = vector.load %arg15[%c0_40, %c0_41] : memref<8x1xf32, #tpu.memory_space<vmem>>, vector<8x1xf32>
    %71 = arith.mulf %60, %60 : vector<8x128xf32>
    %72 = vector.shape_cast %71 : vector<8x128xf32> to vector<1x8x128xf32>
    %cst_42 = arith.constant dense<0.000000e+00> : vector<1xf32>
    %73 = vector.multi_reduction <add>, %72, %cst_42 [1, 2] : vector<1x8x128xf32> to vector<1xf32>
    %74 = vector.shape_cast %73 : vector<1xf32> to vector<1x1x1xf32>
    %75 = vector.extract %74[0, 0, 0] : f32 from vector<1x1x1xf32>
    %76 = vector.broadcast %75 : f32 to vector<8x1xf32>
    %77 = arith.addf %70, %76 : vector<8x1xf32>
    %c0_43 = arith.constant 0 : index
    %c0_44 = arith.constant 0 : index
    %78 = vector.load %arg15[%c0_43, %c0_44] : memref<8x1xf32, #tpu.memory_space<vmem>>, vector<8x1xf32>
    tpu.vector_store %arg15[%c0_43, %c0_44], %77 {strides = array<i32>} : memref<8x1xf32, #tpu.memory_space<vmem>>, vector<8x1xf32>,
    %79 = arith.mulf %56, %60 : vector<8x128xf32>
    %cst_45 = arith.constant dense<0.000000e+00> : vector<8xf32>
    %80 = vector.multi_reduction <add>, %79, %cst_45 [1] : vector<8x128xf32> to vector<8xf32>
    %81 = vector.shape_cast %80 : vector<8xf32> to vector<8x1xf32>
    %c8_i32_46 = arith.constant 8 : i32
    %82 = arith.muli %arg0, %c8_i32_46 : i32
    %83 = tpu.assume_multiple %82, 8 : i32
    %84 = arith.index_cast %83 : i32 to index
    %c0_47 = arith.constant 0 : index
    %85 = vector.load %arg13[%84, %c0_47] : memref<8x1xf32, #tpu.memory_space<vmem>>, vector<8x1xf32>
    tpu.vector_store %arg13[%84, %c0_47], %81 {strides = array<i32>} : memref<8x1xf32, #tpu.memory_space<vmem>>, vector<8x1xf32>,
    %c0_i32_48 = arith.constant 0 : i32
    %86 = arith.cmpi eq, %arg0, %c0_i32_48 : i32
    %87 = arith.extui %86 : i1 to i32
    %c0_i32_49 = arith.constant 0 : i32
    %88 = arith.cmpi ne, %87, %c0_i32_49 : i32
    scf.if %88 {
      %c0_50 = arith.constant 0 : index
      %c0_51 = arith.constant 0 : index
      %89 = vector.load %arg14[%c0_50, %c0_51] : memref<8x1xf32, #tpu.memory_space<vmem>>, vector<8x1xf32>
      %90 = math.rsqrt %89 : vector<8x1xf32>
      %c0_52 = arith.constant 0 : index
      %c0_53 = arith.constant 0 : index
      %91 = vector.load %arg15[%c0_52, %c0_53] : memref<8x1xf32, #tpu.memory_space<vmem>>, vector<8x1xf32>
      %92 = math.rsqrt %91 : vector<8x1xf32>
      %93 = arith.mulf %90, %92 : vector<8x1xf32>
      %c0_54 = arith.constant 0 : index
      %c0_55 = arith.constant 0 : index
      %94 = vector.load %arg13[%c0_54, %c0_55] : memref<8x1xf32, #tpu.memory_space<vmem>>, vector<8x1xf32>
      %95 = arith.mulf %94, %93 : vector<8x1xf32>
      %c0_56 = arith.constant 0 : index
      %c0_57 = arith.constant 0 : index
      %96 = vector.load %arg13[%c0_56, %c0_57] : memref<8x1xf32, #tpu.memory_space<vmem>>, vector<8x1xf32>
      tpu.vector_store %arg13[%c0_56, %c0_57], %95 {strides = array<i32>} : memref<8x1xf32, #tpu.memory_space<vmem>>, vector<8x1xf32>,
    } else {
    }
    return
  }
  func.func @transform_0(%arg0: i32) -> (i32, i32) {
    %c0_i32 = arith.constant 0 : i32
    %c0_i32_0 = arith.constant 0 : i32
    return %arg0, %c0_i32 : i32, i32
  }
  func.func @transform_1(%arg0: i32) -> (i32, i32) {
    %c0_i32 = arith.constant 0 : i32
    %c0_i32_0 = arith.constant 0 : i32
    return %arg0, %c0_i32 : i32, i32
  }
  func.func @transform_2(%arg0: i32) -> (i32, i32) {
    %c0_i32 = arith.constant 0 : i32
    %c0_i32_0 = arith.constant 0 : i32
    %c0_i32_1 = arith.constant 0 : i32
    return %c0_i32, %c0_i32_0 : i32, i32
  }
  func.func @transform_3(%arg0: i32) -> (i32, i32) {
    %c0_i32 = arith.constant 0 : i32
    %c0_i32_0 = arith.constant 0 : i32
    %c0_i32_1 = arith.constant 0 : i32
    return %c0_i32, %c0_i32_0 : i32, i32
  }
  func.func @transform_4(%arg0: i32) -> (i32, i32) {
    %c0_i32 = arith.constant 0 : i32
    %c0_i32_0 = arith.constant 0 : i32
    %c0_i32_1 = arith.constant 0 : i32
    return %c0_i32, %c0_i32_0 : i32, i32
  }
  func.func @transform_5(%arg0: i32) -> (i32, i32) {
    %c0_i32 = arith.constant 0 : i32
    %c0_i32_0 = arith.constant 0 : i32
    %c0_i32_1 = arith.constant 0 : i32
    return %c0_i32, %c0_i32_0 : i32, i32
  }
  func.func @transform_6(%arg0: i32) -> (i32, i32) {
    %c0_i32 = arith.constant 0 : i32
    %c0_i32_0 = arith.constant 0 : i32
    %c0_i32_1 = arith.constant 0 : i32
    return %c0_i32, %c0_i32_0 : i32, i32
  }
  func.func @transform_7(%arg0: i32) -> (i32, i32) {
    %c0_i32 = arith.constant 0 : i32
    %c0_i32_0 = arith.constant 0 : i32
    %c0_i32_1 = arith.constant 0 : i32
    return %c0_i32, %c0_i32_0 : i32, i32
  }
  func.func @transform_8(%arg0: i32) -> (i32, i32) {
    %c0_i32 = arith.constant 0 : i32
    %c0_i32_0 = arith.constant 0 : i32
    %c0_i32_1 = arith.constant 0 : i32
    return %c0_i32, %c0_i32_0 : i32, i32
  }
  func.func @transform_9(%arg0: i32) -> (i32, i32) {
    %c0_i32 = arith.constant 0 : i32
    %c0_i32_0 = arith.constant 0 : i32
    %c0_i32_1 = arith.constant 0 : i32
    return %c0_i32, %c0_i32_0 : i32, i32
  }
  func.func @transform_10(%arg0: i32) -> (i32, i32) {
    %c0_i32 = arith.constant 0 : i32
    %c0_i32_0 = arith.constant 0 : i32
    %c0_i32_1 = arith.constant 0 : i32
    return %c0_i32, %c0_i32_0 : i32, i32
  }
  func.func @transform_11(%arg0: i32) -> (i32, i32) {
    %c0_i32 = arith.constant 0 : i32
    %c0_i32_0 = arith.constant 0 : i32
    %c0_i32_1 = arith.constant 0 : i32
    return %c0_i32, %c0_i32_0 : i32, i32
  }
  func.func @transform_12(%arg0: i32) -> (i32, i32) {
    %c0_i32 = arith.constant 0 : i32
    %c0_i32_0 = arith.constant 0 : i32
    %c0_i32_1 = arith.constant 0 : i32
    return %c0_i32, %c0_i32_0 : i32, i32
  }
}

</mosaic_0001>

<llo_original>
// kernel: tpu_custom_call.1
$region0: #{tpu_custom_call.1}
  #allocation0 [shape = 'u32[]', space=smem, size = 0x4, offset = 0x4, fixed_abs, tag = 'smem constant byte address 0x4 - core index']
  #allocation1 [shape = 'u32[72,128]{1,0:T(1,128)}', space=vmem, size = 0x9000, scoped, tag = 'internal scratch']
  #allocation2 [shape = 'f32[8,1]{1,0:T(8,128)}', space=vmem, size = 0x1000, scoped, tag = 'scratch operand']
  #allocation3 [shape = 'f32[8,1]{1,0:T(8,128)}', space=vmem, size = 0x1000, scoped, tag = 'scratch operand']
  %s0 = inlined_call_operand.vmem [shape: s32[8,1], index: 0, kind: input, shape index: {}]
  %s1 = inlined_call_operand.vmem [shape: s32[8,1], index: 1, kind: input, shape index: {}]
  %s2 = inlined_call_operand.hbm [shape: f32[128,128], index: 2, kind: input, shape index: {}]
  %s3 = inlined_call_operand.hbm [shape: f32[128,128], index: 3, kind: input, shape index: {}]
  %s4 = inlined_call_operand.hbm [shape: f32[128,128], index: 4, kind: input, shape index: {}]
  %s5 = inlined_call_operand.vmem [shape: f32[1,128], index: 5, kind: input, shape index: {}]
  %s6 = inlined_call_operand.hbm [shape: f32[128,128], index: 6, kind: input, shape index: {}]
  %s7 = inlined_call_operand.vmem [shape: f32[1,128], index: 7, kind: input, shape index: {}]
  %s8 = inlined_call_operand.hbm [shape: f32[128,128], index: 8, kind: input, shape index: {}]
  %s9 = inlined_call_operand.vmem [shape: f32[1,128], index: 9, kind: input, shape index: {}]
  %s10 = inlined_call_operand.hbm [shape: f32[128,128], index: 10, kind: input, shape index: {}]
  %s11 = inlined_call_operand.vmem [shape: f32[1,128], index: 11, kind: input, shape index: {}]
  %s12 = inlined_call_operand.vmem [shape: f32[8,1], index: 12, kind: output, shape index: {}]
  %s13 = sld [smem:[#allocation0]]
  $region90: #{tpu_custom_call.1} parent=0
    _
  %s15 = ssub.s32 1, %s13
  %s16 = scalar_select 0, %s15, %s13
  $region1: #{tpu_custom_call.1} parent=0
    #allocation4 [shape = 'u8[65536]{0}', space=vmem, size = 0x10000, scoped, tag = 'input window, operand 2, single buffered']
    #allocation5 [shape = 's32[1]{0}', space=sflag, size = 0x4, scoped, tag = 'scoped memory for tpu_custom_call.1']
    #allocation6 [shape = 'u8[65536]{0}', space=vmem, size = 0x10000, scoped, tag = 'input window, operand 3, single buffered']
    #allocation7 [shape = 's32[1]{0}', space=sflag, size = 0x4, scoped, tag = 'scoped memory for tpu_custom_call.1']
    #allocation8 [shape = 'u8[65536]{0}', space=vmem, size = 0x10000, scoped, tag = 'input window, operand 4, single buffered']
    #allocation9 [shape = 'u8[65536]{0}', space=vmem, size = 0x10000, scoped, tag = 'input window, operand 6, single buffered']
    #allocation10 [shape = 's32[1]{0}', space=sflag, size = 0x4, scoped, tag = 'scoped memory for tpu_custom_call.1']
    #allocation11 [shape = 'u8[65536]{0}', space=vmem, size = 0x10000, scoped, tag = 'input window, operand 8, single buffered']
    #allocation12 [shape = 'u8[65536]{0}', space=vmem, size = 0x10000, scoped, tag = 'input window, operand 10, single buffered']
    #allocation13 [shape = 's32[1]{0}', space=sflag, size = 0x4, scoped, tag = 'scoped memory for tpu_custom_call.1']
    %17 = vsyncpa [#allocation5], 0
    %18 = vsyncpa [#allocation7], 0
    %19 = vsyncpa [#allocation10], 0
    %20 = vsyncpa [#allocation13], 0
    // Predicated region
    $region2: #{tpu_custom_call.1} parent=1 // pred_check
      _
    $region3: #{tpu_custom_call.1} parent=1 // pred_check_branch
      %22 = sbr.rel (0) target = $region5
    $region4: #{tpu_custom_call.1} parent=1 // pred_region
      _
    $region5: #{tpu_custom_call.1} parent=1 // pred_fallthru
      _
    // Predicated region
    $region6: #{tpu_custom_call.1} parent=1 // pred_check
      _
    $region7: #{tpu_custom_call.1} parent=1 // pred_check_branch
      %24 = sbr.rel (0) target = $region9
    $region8: #{tpu_custom_call.1} parent=1 // pred_region
      _
    $region9: #{tpu_custom_call.1} parent=1 // pred_fallthru
      _
    // Predicated region
    $region10: #{tpu_custom_call.1} parent=1 // pred_check
      _
    $region11: #{tpu_custom_call.1} parent=1 // pred_check_branch
      %26 = sbr.rel (0) target = $region13
    $region12: #{tpu_custom_call.1} parent=1 // pred_region
      %28 = vsyncadd [#allocation5], 0
      %s29 = sshll.u32 %s2, 4
      %s30 = int_to_ptr.hbm [resolvable:$true] %s29
      %s31 = sshll.u32 [#allocation4], 4
      %s32 = int_to_ptr.vmem [resolvable:$true] %s31
      %37 = dma.hbm_to_vmem [thread:$0]  %s30, 2048, %s32, [#allocation5], 128, 128, 8
    $region13: #{tpu_custom_call.1} parent=1 // pred_fallthru
      _
    // Predicated region
    $region14: #{tpu_custom_call.1} parent=1 // pred_check
      _
    $region15: #{tpu_custom_call.1} parent=1 // pred_check_branch
      %39 = sbr.rel (0) target = $region17
    $region16: #{tpu_custom_call.1} parent=1 // pred_region
      %41 = vsyncadd [#allocation7], 0
      %s42 = sshll.u32 %s3, 4
      %s43 = int_to_ptr.hbm [resolvable:$true] %s42
      %s44 = sshll.u32 [#allocation6], 4
      %s45 = int_to_ptr.vmem [resolvable:$true] %s44
      %50 = dma.hbm_to_vmem [thread:$0]  %s43, 2048, %s45, [#allocation7], 128, 128, 8
    $region17: #{tpu_custom_call.1} parent=1 // pred_fallthru
      _
    // Predicated region
    $region18: #{tpu_custom_call.1} parent=1 // pred_check
      _
    $region19: #{tpu_custom_call.1} parent=1 // pred_check_branch
      %52 = sbr.rel (0) target = $region21
    $region20: #{tpu_custom_call.1} parent=1 // pred_region
      %54 = vsyncadd [#allocation7], 0
      %s55 = sshll.u32 %s4, 4
      %s56 = int_to_ptr.hbm [resolvable:$true] %s55
      %s57 = sshll.u32 [#allocation8], 4
      %s58 = int_to_ptr.vmem [resolvable:$true] %s57
      %63 = dma.hbm_to_vmem [thread:$0]  %s56, 2048, %s58, [#allocation7], 128, 128, 8
    $region21: #{tpu_custom_call.1} parent=1 // pred_fallthru
      _
    // Predicated region
    $region22: #{tpu_custom_call.1} parent=1 // pred_check
      _
    $region23: #{tpu_custom_call.1} parent=1 // pred_check_branch
      %65 = sbr.rel (0) target = $region25
    $region24: #{tpu_custom_call.1} parent=1 // pred_region
      _
    $region25: #{tpu_custom_call.1} parent=1 // pred_fallthru
      _
    // Predicated region
    $region26: #{tpu_custom_call.1} parent=1 // pred_check
      _
    $region27: #{tpu_custom_call.1} parent=1 // pred_check_branch
      %67 = sbr.rel (0) target = $region29
    $region28: #{tpu_custom_call.1} parent=1 // pred_region
      %69 = vsyncadd [#allocation10], 0
      %s70 = sshll.u32 %s6, 4
      %s71 = int_to_ptr.hbm [resolvable:$true] %s70
      %s72 = sshll.u32 [#allocation9], 4
      %s73 = int_to_ptr.vmem [resolvable:$true] %s72
      %78 = dma.hbm_to_vmem [thread:$0]  %s71, 2048, %s73, [#allocation10], 128, 128, 8
    $region29: #{tpu_custom_call.1} parent=1 // pred_fallthru
      _
    // Predicated region
    $region30: #{tpu_custom_call.1} parent=1 // pred_check
      _
    $region31: #{tpu_custom_call.1} parent=1 // pred_check_branch
      %80 = sbr.rel (0) target = $region33
    $region32: #{tpu_custom_call.1} parent=1 // pred_region
      _
    $region33: #{tpu_custom_call.1} parent=1 // pred_fallthru
      _
    // Predicated region
    $region34: #{tpu_custom_call.1} parent=1 // pred_check
      _
    $region35: #{tpu_custom_call.1} parent=1 // pred_check_branch
      %82 = sbr.rel (0) target = $region37
    $region36: #{tpu_custom_call.1} parent=1 // pred_region
      %84 = vsyncadd [#allocation10], 0
      %s85 = sshll.u32 %s8, 4
      %s86 = int_to_ptr.hbm [resolvable:$true] %s85
      %s87 = sshll.u32 [#allocation11], 4
      %s88 = int_to_ptr.vmem [resolvable:$true] %s87
      %93 = dma.hbm_to_vmem [thread:$0]  %s86, 2048, %s88, [#allocation10], 128, 128, 8
    $region37: #{tpu_custom_call.1} parent=1 // pred_fallthru
      _
    // Predicated region
    $region38: #{tpu_custom_call.1} parent=1 // pred_check
      _
    $region39: #{tpu_custom_call.1} parent=1 // pred_check_branch
      %95 = sbr.rel (0) target = $region41
    $region40: #{tpu_custom_call.1} parent=1 // pred_region
      _
    $region41: #{tpu_custom_call.1} parent=1 // pred_fallthru
      _
    // Predicated region
    $region42: #{tpu_custom_call.1} parent=1 // pred_check
      _
    $region43: #{tpu_custom_call.1} parent=1 // pred_check_branch
      %97 = sbr.rel (0) target = $region45
    $region44: #{tpu_custom_call.1} parent=1 // pred_region
      %99 = vsyncadd [#allocation13], 0
      %s100 = sshll.u32 %s10, 4
      %s101 = int_to_ptr.hbm [resolvable:$true] %s100
      %s102 = sshll.u32 [#allocation12], 4
      %s103 = int_to_ptr.vmem [resolvable:$true] %s102
      %108 = dma.hbm_to_vmem [thread:$0]  %s101, 2048, %s103, [#allocation13], 128, 128, 8
    $region45: #{tpu_custom_call.1} parent=1 // pred_fallthru
      _
    // Predicated region
    $region46: #{tpu_custom_call.1} parent=1 // pred_check
      _
    $region47: #{tpu_custom_call.1} parent=1 // pred_check_branch
      %110 = sbr.rel (0) target = $region49
    $region48: #{tpu_custom_call.1} parent=1 // pred_region
      _
    $region49: #{tpu_custom_call.1} parent=1 // pred_fallthru
      _
    // Predicated region
    $region50: #{tpu_custom_call.1} parent=1 // pred_check
      _
    $region51: #{tpu_custom_call.1} parent=1 // pred_check_branch
      %112 = sbr.rel (0) target = $region53
    $region52: #{tpu_custom_call.1} parent=1 // pred_region
      %114 = dma.done [#allocation5], 2048
    $region53: #{tpu_custom_call.1} parent=1 // pred_fallthru
      _
    // Predicated region
    $region54: #{tpu_custom_call.1} parent=1 // pred_check
      _
    $region55: #{tpu_custom_call.1} parent=1 // pred_check_branch
      %116 = sbr.rel (0) target = $region57
    $region56: #{tpu_custom_call.1} parent=1 // pred_region
      %118 = dma.done [#allocation7], 2048
    $region57: #{tpu_custom_call.1} parent=1 // pred_fallthru
      _
    // Predicated region
    $region58: #{tpu_custom_call.1} parent=1 // pred_check
      _
    $region59: #{tpu_custom_call.1} parent=1 // pred_check_branch
      %120 = sbr.rel (0) target = $region61
    $region60: #{tpu_custom_call.1} parent=1 // pred_region
      %122 = dma.done [#allocation7], 2048
    $region61: #{tpu_custom_call.1} parent=1 // pred_fallthru
      _
    // Predicated region
    $region62: #{tpu_custom_call.1} parent=1 // pred_check
      _
    $region63: #{tpu_custom_call.1} parent=1 // pred_check_branch
      %124 = sbr.rel (0) target = $region65
    $region64: #{tpu_custom_call.1} parent=1 // pred_region
      %126 = dma.done [#allocation10], 2048
    $region65: #{tpu_custom_call.1} parent=1 // pred_fallthru
      _
    // Predicated region
    $region66: #{tpu_custom_call.1} parent=1 // pred_check
      _
    $region67: #{tpu_custom_call.1} parent=1 // pred_check_branch
      %128 = sbr.rel (0) target = $region69
    $region68: #{tpu_custom_call.1} parent=1 // pred_region
      %130 = dma.done [#allocation10], 2048
    $region69: #{tpu_custom_call.1} parent=1 // pred_fallthru
      _
    // Predicated region
    $region70: #{tpu_custom_call.1} parent=1 // pred_check
      _
    $region71: #{tpu_custom_call.1} parent=1 // pred_check_branch
      %132 = sbr.rel (0) target = $region73
    $region72: #{tpu_custom_call.1} parent=1 // pred_region
      %134 = dma.done [#allocation13], 2048
    $region73: #{tpu_custom_call.1} parent=1 // pred_fallthru
      _
    %p135 = scmp.eq.s32.totalorder 0, 0
    // Predicated region
    $region74: #{tpu_custom_call.1} parent=1 // pred_check
      %p136 = pneg %p135
    $region75: #{tpu_custom_call.1} parent=1 // pred_check_branch
      %138 = sbr.rel (%p136) target = $region77
    $region76: #{tpu_custom_call.1} parent=1 // pred_region
      %vm139 = vcmask 7168
      %140 = vst.msk [vmem:[#allocation2] sm:$0xff] %vm139, 0.0
      %141 = vst.msk [vmem:[#allocation3] sm:$0xff] %vm139, 0.0
    $region77: #{tpu_custom_call.1} parent=1 // pred_fallthru
      _
    %v142 = vld [vmem:[%s0] sm:$0xff]
    %v143 = vld [vmem:[%s1] sm:$0xff]
    %v144 = vlaneseq
    %v145 = vand.u32 %v144, 127
    %146 = vset.pattern.permute.xlu0 0
    %147 = vperm.xlu0 %146, %v142
    %v148 = vpop.permute.xlu0 %147
    %vm149 = vcmp.eq.s32.totalorder %v145, %v148
    %v150 = vsel %vm149, 1, 0
    %v151 = vcvt.s32.f32 %v150
    %152 = vset.pattern.permute.xlu0 0
    %153 = vperm.xlu0 %152, %v143
    %v154 = vpop.permute.xlu0 %153
    %vm155 = vcmp.eq.s32.totalorder %v145, %v154
    %v156 = vsel %vm155, 1, 0
    %v157 = vcvt.s32.f32 %v156
    %v158 = vld [vmem:[#allocation4] sm:$0xff]
    %v159 = vld [vmem:[#allocation4 + $0x8] sm:$0xff]
    %v160 = vld [vmem:[#allocation4 + $0x10] sm:$0xff]
    %v161 = vld [vmem:[#allocation4 + $0x18] sm:$0xff]
    %v162 = vld [vmem:[#allocation4 + $0x20] sm:$0xff]
    %v163 = vld [vmem:[#allocation4 + $0x28] sm:$0xff]
    %v164 = vld [vmem:[#allocation4 + $0x30] sm:$0xff]
    %v165 = vld [vmem:[#allocation4 + $0x38] sm:$0xff]
    %v166 = vld [vmem:[#allocation4 + $0x40] sm:$0xff]
    %v167 = vld [vmem:[#allocation4 + $0x48] sm:$0xff]
    %v168 = vld [vmem:[#allocation4 + $0x50] sm:$0xff]
    %v169 = vld [vmem:[#allocation4 + $0x58] sm:$0xff]
    %v170 = vld [vmem:[#allocation4 + $0x60] sm:$0xff]
    %v171 = vld [vmem:[#allocation4 + $0x68] sm:$0xff]
    %v172 = vld [vmem:[#allocation4 + $0x70] sm:$0xff]
    %v173 = vld [vmem:[#allocation4 + $0x78] sm:$0xff]
    %174 = vmatpush.msra.mxu0 %v173
    %175 = vmatpush.msra.mxu0 %v172
    %176 = vmatpush.msra.mxu0 %v171
    %177 = vmatpush.msra.mxu0 %v170
    %178 = vmatpush.msra.mxu0 %v169
    %179 = vmatpush.msra.mxu0 %v168
    %180 = vmatpush.msra.mxu0 %v167
    %181 = vmatpush.msra.mxu0 %v166
    %182 = vmatpush.msra.mxu0 %v165
    %183 = vmatpush.msra.mxu0 %v164
    %184 = vmatpush.msra.mxu0 %v163
    %185 = vmatpush.msra.mxu0 %v162
    %186 = vmatpush.msra.mxu0 %v161
    %187 = vmatpush.msra.mxu0 %v160
    %188 = vmatpush.msra.mxu0 %v159
    %189 = vmatpush.msra.mxu0 %v158
    %190 = vmatmul.f32.gmra.mxu0 %v151
    %v191 = vpop.f32.mrf.mxu0
    %v192 = vadd.f32 0.0, %v191
    %193 = vdwg.mxu0
    %v194 = vld [vmem:[#allocation6] sm:$0xff]
    %v195 = vld [vmem:[#allocation6 + $0x8] sm:$0xff]
    %v196 = vld [vmem:[#allocation6 + $0x10] sm:$0xff]
    %v197 = vld [vmem:[#allocation6 + $0x18] sm:$0xff]
    %v198 = vld [vmem:[#allocation6 + $0x20] sm:$0xff]
    %v199 = vld [vmem:[#allocation6 + $0x28] sm:$0xff]
    %v200 = vld [vmem:[#allocation6 + $0x30] sm:$0xff]
    %v201 = vld [vmem:[#allocation6 + $0x38] sm:$0xff]
    %v202 = vld [vmem:[#allocation6 + $0x40] sm:$0xff]
    %v203 = vld [vmem:[#allocation6 + $0x48] sm:$0xff]
    %v204 = vld [vmem:[#allocation6 + $0x50] sm:$0xff]
    %v205 = vld [vmem:[#allocation6 + $0x58] sm:$0xff]
    %v206 = vld [vmem:[#allocation6 + $0x60] sm:$0xff]
    %v207 = vld [vmem:[#allocation6 + $0x68] sm:$0xff]
    %v208 = vld [vmem:[#allocation6 + $0x70] sm:$0xff]
    %v209 = vld [vmem:[#allocation6 + $0x78] sm:$0xff]
    %210 = vmatpush.msra.mxu0 %v209
    %211 = vmatpush.msra.mxu0 %v208
    %212 = vmatpush.msra.mxu0 %v207
    %213 = vmatpush.msra.mxu0 %v206
    %214 = vmatpush.msra.mxu0 %v205
    %215 = vmatpush.msra.mxu0 %v204
    %216 = vmatpush.msra.mxu0 %v203
    %217 = vmatpush.msra.mxu0 %v202
    %218 = vmatpush.msra.mxu0 %v201
    %219 = vmatpush.msra.mxu0 %v200
    %220 = vmatpush.msra.mxu0 %v199
    %221 = vmatpush.msra.mxu0 %v198
    %222 = vmatpush.msra.mxu0 %v197
    %223 = vmatpush.msra.mxu0 %v196
    %224 = vmatpush.msra.mxu0 %v195
    %225 = vmatpush.msra.mxu0 %v194
    %226 = vmatmul.f32.gmra.mxu0 %v157
    %v227 = vpop.f32.mrf.mxu0
    %v228 = vadd.f32 0.0, %v227
    %229 = vdwg.mxu0
    %v230 = vld [vmem:[%s5] sm:$0x1]
    %v231 = vld [vmem:[#allocation8] sm:$0xff]
    %v232 = vld [vmem:[#allocation8 + $0x8] sm:$0xff]
    %v233 = vld [vmem:[#allocation8 + $0x10] sm:$0xff]
    %v234 = vld [vmem:[#allocation8 + $0x18] sm:$0xff]
    %v235 = vld [vmem:[#allocation8 + $0x20] sm:$0xff]
    %v236 = vld [vmem:[#allocation8 + $0x28] sm:$0xff]
    %v237 = vld [vmem:[#allocation8 + $0x30] sm:$0xff]
    %v238 = vld [vmem:[#allocation8 + $0x38] sm:$0xff]
    %v239 = vld [vmem:[#allocation8 + $0x40] sm:$0xff]
    %v240 = vld [vmem:[#allocation8 + $0x48] sm:$0xff]
    %v241 = vld [vmem:[#allocation8 + $0x50] sm:$0xff]
    %v242 = vld [vmem:[#allocation8 + $0x58] sm:$0xff]
    %v243 = vld [vmem:[#allocation8 + $0x60] sm:$0xff]
    %v244 = vld [vmem:[#allocation8 + $0x68] sm:$0xff]
    %v245 = vld [vmem:[#allocation8 + $0x70] sm:$0xff]
    %v246 = vld [vmem:[#allocation8 + $0x78] sm:$0xff]
    %v248 = vperm.slane %v230, 0
    %250 = vmatpush.msra.mxu0 %v246
    %251 = vmatpush.msra.mxu0 %v245
    %252 = vmatpush.msra.mxu0 %v244
    %253 = vmatpush.msra.mxu0 %v243
    %254 = vmatpush.msra.mxu0 %v242
    %255 = vmatpush.msra.mxu0 %v241
    %256 = vmatpush.msra.mxu0 %v240
    %257 = vmatpush.msra.mxu0 %v239
    %258 = vmatpush.msra.mxu0 %v238
    %259 = vmatpush.msra.mxu0 %v237
    %260 = vmatpush.msra.mxu0 %v236
    %261 = vmatpush.msra.mxu0 %v235
    %262 = vmatpush.msra.mxu0 %v234
    %263 = vmatpush.msra.mxu0 %v233
    %264 = vmatpush.msra.mxu0 %v232
    %265 = vmatpush.msra.mxu0 %v231
    %266 = vmatmul.f32.gmra.mxu0 %v192
    %v267 = vpop.f32.mrf.mxu0
    %v268 = vadd.f32 %v248, %v267
    %269 = vdwg.mxu0
    %v270 = vmax.f32 %v268, 0.0
    %v271 = vld [vmem:[%s7] sm:$0x1]
    %v272 = vld [vmem:[#allocation9] sm:$0xff]
    %v273 = vld [vmem:[#allocation9 + $0x8] sm:$0xff]
    %v274 = vld [vmem:[#allocation9 + $0x10] sm:$0xff]
    %v275 = vld [vmem:[#allocation9 + $0x18] sm:$0xff]
    %v276 = vld [vmem:[#allocation9 + $0x20] sm:$0xff]
    %v277 = vld [vmem:[#allocation9 + $0x28] sm:$0xff]
    %v278 = vld [vmem:[#allocation9 + $0x30] sm:$0xff]
    %v279 = vld [vmem:[#allocation9 + $0x38] sm:$0xff]
    %v280 = vld [vmem:[#allocation9 + $0x40] sm:$0xff]
    %v281 = vld [vmem:[#allocation9 + $0x48] sm:$0xff]
    %v282 = vld [vmem:[#allocation9 + $0x50] sm:$0xff]
    %v283 = vld [vmem:[#allocation9 + $0x58] sm:$0xff]
    %v284 = vld [vmem:[#allocation9 + $0x60] sm:$0xff]
    %v285 = vld [vmem:[#allocation9 + $0x68] sm:$0xff]
    %v286 = vld [vmem:[#allocation9 + $0x70] sm:$0xff]
    %v287 = vld [vmem:[#allocation9 + $0x78] sm:$0xff]
    %v289 = vperm.slane %v271, 0
    %291 = vmatpush.msra.mxu0 %v287
    %292 = vmatpush.msra.mxu0 %v286
    %293 = vmatpush.msra.mxu0 %v285
    %294 = vmatpush.msra.mxu0 %v284
    %295 = vmatpush.msra.mxu0 %v283
    %296 = vmatpush.msra.mxu0 %v282
    %297 = vmatpush.msra.mxu0 %v281
    %298 = vmatpush.msra.mxu0 %v280
    %299 = vmatpush.msra.mxu0 %v279
    %300 = vmatpush.msra.mxu0 %v278
    %301 = vmatpush.msra.mxu0 %v277
    %302 = vmatpush.msra.mxu0 %v276
    %303 = vmatpush.msra.mxu0 %v275
    %304 = vmatpush.msra.mxu0 %v274
    %305 = vmatpush.msra.mxu0 %v273
    %306 = vmatpush.msra.mxu0 %v272
    %307 = vmatmul.f32.gmra.mxu0 %v270
    %v308 = vpop.f32.mrf.mxu0
    %v309 = vadd.f32 %v289, %v308
    %310 = vdwg.mxu0
    %v311 = vmax.f32 %v309, 0.0
    %v312 = vld [vmem:[%s9] sm:$0x1]
    %v313 = vld [vmem:[#allocation11] sm:$0xff]
    %v314 = vld [vmem:[#allocation11 + $0x8] sm:$0xff]
    %v315 = vld [vmem:[#allocation11 + $0x10] sm:$0xff]
    %v316 = vld [vmem:[#allocation11 + $0x18] sm:$0xff]
    %v317 = vld [vmem:[#allocation11 + $0x20] sm:$0xff]
    %v318 = vld [vmem:[#allocation11 + $0x28] sm:$0xff]
    %v319 = vld [vmem:[#allocation11 + $0x30] sm:$0xff]
    %v320 = vld [vmem:[#allocation11 + $0x38] sm:$0xff]
    %v321 = vld [vmem:[#allocation11 + $0x40] sm:$0xff]
    %v322 = vld [vmem:[#allocation11 + $0x48] sm:$0xff]
    %v323 = vld [vmem:[#allocation11 + $0x50] sm:$0xff]
    %v324 = vld [vmem:[#allocation11 + $0x58] sm:$0xff]
    %v325 = vld [vmem:[#allocation11 + $0x60] sm:$0xff]
    %v326 = vld [vmem:[#allocation11 + $0x68] sm:$0xff]
    %v327 = vld [vmem:[#allocation11 + $0x70] sm:$0xff]
    %v328 = vld [vmem:[#allocation11 + $0x78] sm:$0xff]
    %v330 = vperm.slane %v312, 0
    %332 = vmatpush.msra.mxu0 %v328
    %333 = vmatpush.msra.mxu0 %v327
    %334 = vmatpush.msra.mxu0 %v326
    %335 = vmatpush.msra.mxu0 %v325
    %336 = vmatpush.msra.mxu0 %v324
    %337 = vmatpush.msra.mxu0 %v323
    %338 = vmatpush.msra.mxu0 %v322
    %339 = vmatpush.msra.mxu0 %v321
    %340 = vmatpush.msra.mxu0 %v320
    %341 = vmatpush.msra.mxu0 %v319
    %342 = vmatpush.msra.mxu0 %v318
    %343 = vmatpush.msra.mxu0 %v317
    %344 = vmatpush.msra.mxu0 %v316
    %345 = vmatpush.msra.mxu0 %v315
    %346 = vmatpush.msra.mxu0 %v314
    %347 = vmatpush.msra.mxu0 %v313
    %348 = vmatmul.f32.gmra.mxu0 %v228
    %v349 = vpop.f32.mrf.mxu0
    %v350 = vadd.f32 %v330, %v349
    %351 = vdwg.mxu0
    %v352 = vmax.f32 %v350, 0.0
    %v353 = vld [vmem:[%s11] sm:$0x1]
    %v354 = vld [vmem:[#allocation12] sm:$0xff]
    %v355 = vld [vmem:[#allocation12 + $0x8] sm:$0xff]
    %v356 = vld [vmem:[#allocation12 + $0x10] sm:$0xff]
    %v357 = vld [vmem:[#allocation12 + $0x18] sm:$0xff]
    %v358 = vld [vmem:[#allocation12 + $0x20] sm:$0xff]
    %v359 = vld [vmem:[#allocation12 + $0x28] sm:$0xff]
    %v360 = vld [vmem:[#allocation12 + $0x30] sm:$0xff]
    %v361 = vld [vmem:[#allocation12 + $0x38] sm:$0xff]
    %v362 = vld [vmem:[#allocation12 + $0x40] sm:$0xff]
    %v363 = vld [vmem:[#allocation12 + $0x48] sm:$0xff]
    %v364 = vld [vmem:[#allocation12 + $0x50] sm:$0xff]
    %v365 = vld [vmem:[#allocation12 + $0x58] sm:$0xff]
    %v366 = vld [vmem:[#allocation12 + $0x60] sm:$0xff]
    %v367 = vld [vmem:[#allocation12 + $0x68] sm:$0xff]
    %v368 = vld [vmem:[#allocation12 + $0x70] sm:$0xff]
    %v369 = vld [vmem:[#allocation12 + $0x78] sm:$0xff]
    %v371 = vperm.slane %v353, 0
    %373 = vmatpush.msra.mxu0 %v369
    %374 = vmatpush.msra.mxu0 %v368
    %375 = vmatpush.msra.mxu0 %v367
    %376 = vmatpush.msra.mxu0 %v366
    %377 = vmatpush.msra.mxu0 %v365
    %378 = vmatpush.msra.mxu0 %v364
    %379 = vmatpush.msra.mxu0 %v363
    %380 = vmatpush.msra.mxu0 %v362
    %381 = vmatpush.msra.mxu0 %v361
    %382 = vmatpush.msra.mxu0 %v360
    %383 = vmatpush.msra.mxu0 %v359
    %384 = vmatpush.msra.mxu0 %v358
    %385 = vmatpush.msra.mxu0 %v357
    %386 = vmatpush.msra.mxu0 %v356
    %387 = vmatpush.msra.mxu0 %v355
    %388 = vmatpush.msra.mxu0 %v354
    %389 = vmatmul.f32.gmra.mxu0 %v352
    %v390 = vpop.f32.mrf.mxu0
    %v391 = vadd.f32 %v371, %v390
    %392 = vdwg.mxu0
    %v393 = vmax.f32 %v391, 0.0
    %v394 = vlaneseq
    %v395 = vshrl.u32 %v394, 7
    %s396 = smul.u32 0, 8
    %v397 = vstv %s396
    %v398 = vadd.s32 %v395, %v397
    %vm399 = vcmp.lt.s32.totalorder %v398, 6
    %v400 = vsel %vm399, 1, 0
    %vm401 = vcmp.eq.s32.totalorder %v400, 1
    %v402 = vsel %vm401, %v311, 0.0
    %v403 = vsel %vm401, %v393, 0.0
    %v404 = vld [vmem:[#allocation2] sm:$0xff]
    %v405 = vmul.f32 %v402, %v402
    %406 = vadd.xlane.f32.xlu0 %v405
    %v407 = vpop.xlane.xlu0 %406
    %v408 = vrot.slane %v407, 4
    %v409 = vadd.f32 %v407, %v408
    %v410 = vrot.slane %v409, 2
    %v411 = vadd.f32 %v409, %v410
    %v412 = vrot.slane %v411, 1
    %v413 = vadd.f32 %v411, %v412
    %s414 = vtos %v413
    %v415 = vstv %s414
    %v416 = vadd.f32 %v404, %v415
    %vm417 = vcmask 7168
    %418 = vst.msk [vmem:[#allocation2] sm:$0xff] %vm417, %v416
    %v419 = vld [vmem:[#allocation3] sm:$0xff]
    %v420 = vmul.f32 %v403, %v403
    %421 = vadd.xlane.f32.xlu0 %v420
    %v422 = vpop.xlane.xlu0 %421
    %v423 = vrot.slane %v422, 4
    %v424 = vadd.f32 %v422, %v423
    %v425 = vrot.slane %v424, 2
    %v426 = vadd.f32 %v424, %v425
    %v427 = vrot.slane %v426, 1
    %v428 = vadd.f32 %v426, %v427
    %s429 = vtos %v428
    %v430 = vstv %s429
    %v431 = vadd.f32 %v419, %v430
    %432 = vst.msk [vmem:[#allocation3] sm:$0xff] %vm417, %v431
    %v433 = vmul.f32 %v402, %v403
    %434 = vadd.xlane.f32.xlu0 %v433
    %v435 = vpop.xlane.xlu0 %434
    %s436 = scalar_lea.vmem %s12, %s396
    %437 = vst.msk [vmem:[%s436] sm:$0xff] %vm417, %v435
    // Predicated region
    $region78: #{tpu_custom_call.1} parent=1 // pred_check
      %p438 = pneg %p135
    $region79: #{tpu_custom_call.1} parent=1 // pred_check_branch
      %440 = sbr.rel (%p438) target = $region81
    $region80: #{tpu_custom_call.1} parent=1 // pred_region
      %v441 = vld [vmem:[#allocation2] sm:$0xff]
      %v442 = vrsqrt.pop %v441
      %v443 = vmul.f32 %v442, %v441
      %v444 = vmul.f32 %v443, %v442
      %v445 = vmul.f32 0.5, %v444
      %v446 = vsub.f32 1.5, %v445
      %v447 = vmul.f32 %v442, %v446
      %vm448 = vweird.f32 %v441
      %vm449 = vweird.f32 %v442
      %vm450 = vmor %vm448, %vm449
      %v451 = vsel %vm450, %v442, %v447
      %v452 = vld [vmem:[#allocation3] sm:$0xff]
      %v453 = vrsqrt.pop %v452
      %v454 = vmul.f32 %v453, %v452
      %v455 = vmul.f32 %v454, %v453
      %v456 = vmul.f32 0.5, %v455
      %v457 = vsub.f32 1.5, %v456
      %v458 = vmul.f32 %v453, %v457
      %vm459 = vweird.f32 %v452
      %vm460 = vweird.f32 %v453
      %vm461 = vmor %vm459, %vm460
      %v462 = vsel %vm461, %v453, %v458
      %v463 = vmul.f32 %v451, %v462
      %v464 = vld [vmem:[%s12] sm:$0xff]
      %v465 = vmul.f32 %v464, %v463
      %466 = vst.msk [vmem:[%s12] sm:$0xff] %vm417, %v465
    $region81: #{tpu_custom_call.1} parent=1 // pred_fallthru
      _
    // Predicated region
    $region82: #{tpu_custom_call.1} parent=1 // pred_check
      _
    $region83: #{tpu_custom_call.1} parent=1 // pred_check_branch
      %468 = sbr.rel (0) target = $region85
    $region84: #{tpu_custom_call.1} parent=1 // pred_region
      _
    $region85: #{tpu_custom_call.1} parent=1 // pred_fallthru
      _
    // Predicated region
    $region86: #{tpu_custom_call.1} parent=1 // pred_check
      _
    $region87: #{tpu_custom_call.1} parent=1 // pred_check_branch
      %470 = sbr.rel (0) target = $region89
    $region88: #{tpu_custom_call.1} parent=1 // pred_region
      _
    $region89: #{tpu_custom_call.1} parent=1 // pred_fallthru
      _
    %471 = vsyncpa [#allocation5], 1
    %472 = vsyncpa [#allocation7], 1
    %473 = vsyncpa [#allocation10], 1
    %474 = vsyncpa [#allocation13], 1

</llo_original>
